<compile_context>
chip_gen: v7x
topology: tpu7x:2x2x1
jax: 0.10.0
libtpu: 0.0.40
codegen_flags: <defaults>
</compile_context>

<pallas_src>
import functools

import jax
import jax.numpy as jnp
from jax.experimental import pallas as pl
from jax.experimental.pallas import tpu as pltpu


BN_EPS = 1e-5
LANE = 128
SUBLANE = 8
MAX_TB = 1024            # largest batch tile (keeps >=2 grid steps for B > 512)


def _round_up(n, m):
    return ((n + m - 1) // m) * m


# ---------------------------------------------------------------------------
# Fused MLP kernel
# ---------------------------------------------------------------------------
def _fused_mlp_kernel(x_ref, w_ref, b_ref, o_ref, *, num_layers, num_inputs):
    """All Linear(+ReLU) layers in one kernel. BN already folded into (W, b).

    x_ref : (TB, num_inputs) f32   -- native-width input tile, cast here
    w_ref : (L, P, P)        bf16  -- VMEM-resident weight stack
    b_ref : (L, 1, P)        f32
    o_ref : (TB, P)          bf16
    """
    P = w_ref.shape[-1]
    act = x_ref[...].astype(jnp.bfloat16)                     # (TB, Kin) bf16
    for l in range(num_layers):                                # static unroll
        w = w_ref[l]                                           # (P, P) bf16
        if l == 0 and num_inputs != P:
            w = w[:num_inputs, :]                              # (Kin, P)
        y = jnp.dot(act, w, preferred_element_type=jnp.float32) + b_ref[l]
        if l < num_layers - 1:
            act = jnp.maximum(y, 0.0).astype(jnp.bfloat16)     # ReLU -> bf16
        else:
            o_ref[...] = y.astype(o_ref.dtype)                 # bf16 store


@functools.partial(jax.jit, static_argnums=(3,))
def forward(x, w_stack, b_stack, num_outputs):
    """x: (B, num_inputs) f32. Returns (B, num_outputs) f32."""
    B, num_inputs = x.shape
    L, P, _ = w_stack.shape

    # Adaptive batch tile: up to MAX_TB rows, 8-aligned, minimal tail padding,
    # and >=2 grid steps once the batch is large enough to benefit.
    if B <= MAX_TB // 2:
        num_tiles = 1
    else:
        num_tiles = max(2, pl.cdiv(B, MAX_TB))
    TB = _round_up(pl.cdiv(B, num_tiles), SUBLANE)
    B_pad = num_tiles * TB

    # Row-only padding at native (narrow) feature width -- no 128-wide
    # materialization, and a no-op when TB divides B.
    x_in = x if B_pad == B else jnp.pad(x, ((0, B_pad - B), (0, 0)))

    out = pl.pallas_call(
        functools.partial(_fused_mlp_kernel, num_layers=L, num_inputs=num_inputs),
        out_shape=jax.ShapeDtypeStruct((B_pad, P), jnp.bfloat16),
        grid_spec=pltpu.PrefetchScalarGridSpec(
            num_scalar_prefetch=0,
            grid=(num_tiles,),
            in_specs=[
                pl.BlockSpec((TB, num_inputs), lambda i: (i, 0)),  # activations
                pl.BlockSpec((L, P, P), lambda i: (0, 0, 0)),      # weights (resident)
                pl.BlockSpec((L, 1, P), lambda i: (0, 0, 0)),      # biases  (resident)
            ],
            out_specs=pl.BlockSpec((TB, P), lambda i: (i, 0)),
        ),
        compiler_params=pltpu.CompilerParams(
            dimension_semantics=("parallel",)),
    )(x_in, w_stack, b_stack)
    return out[:B, :num_outputs].astype(jnp.float32)


# ---------------------------------------------------------------------------
# Parameter construction (mirrors MicroneedleQualityModel.__init__)
# ---------------------------------------------------------------------------
def init_params(key, num_inputs, num_outputs, layer_sizes):
    """Xavier-uniform W, zero bias; fresh BatchNorm1d stats (eval mode)."""
    layers = []
    prev = num_inputs
    for size in layer_sizes:
        key, sub = jax.random.split(key)
        bound = (6.0 / (prev + size)) ** 0.5
        w = jax.random.uniform(sub, (prev, size), jnp.float32, -bound, bound)
        layers.append(dict(
            w=w,
            b=jnp.zeros((size,), jnp.float32),
            gamma=jnp.ones((size,), jnp.float32),
            beta=jnp.zeros((size,), jnp.float32),
            mean=jnp.zeros((size,), jnp.float32),
            var=jnp.ones((size,), jnp.float32),
        ))
        prev = size
    key, sub = jax.random.split(key)
    bound = (6.0 / (prev + num_outputs)) ** 0.5
    w_out = jax.random.uniform(sub, (prev, num_outputs), jnp.float32, -bound, bound)
    b_out = jnp.zeros((num_outputs,), jnp.float32)
    return layers, (w_out, b_out)


def prepare_params(layers, out_params, num_inputs):
    """Fold eval-mode BN into the next Linear, pad to lane-dense 128, cast W to
    bf16, and stack everything into one (L,P,P) weight + (L,1,P) bias tensor."""
    w_out, b_out = out_params

    # Effective (W, b) per matmul after folding the preceding BN affine:
    #   (scale*y + shift) @ W + b == y @ (diag(scale) W) + (shift @ W + b)
    eff = []
    pend_scale, pend_shift = None, None
    for p in layers:
        w, b = p["w"], p["b"]
        if pend_scale is not None:
            b = b + pend_shift @ w
            w = pend_scale[:, None] * w
        eff.append((w, b))
        scale = p["gamma"] / jnp.sqrt(p["var"] + BN_EPS)
        shift = p["beta"] - p["mean"] * scale
        pend_scale, pend_shift = scale, shift
    w, b = w_out, b_out
    if pend_scale is not None:
        b = b + pend_shift @ w
        w = pend_scale[:, None] * w
    eff.append((w, b))

    widths = [num_inputs] + [w.shape[1] for w, _ in eff]
    P = _round_up(max(widths), LANE)
    L = len(eff)
    w_stack = jnp.zeros((L, P, P), jnp.bfloat16)
    b_stack = jnp.zeros((L, 1, P), jnp.float32)
    for l, (w, b) in enumerate(eff):
        ki, ko = w.shape
        w_stack = w_stack.at[l, :ki, :ko].set(w.astype(jnp.bfloat16))
        b_stack = b_stack.at[l, 0, :ko].set(b)
    return w_stack, b_stack


# ---------------------------------------------------------------------------
# References
# ---------------------------------------------------------------------------
def forward_ref_f32(x, layers, out_params):
    """Pure-f32 eval-mode reference mirroring the PyTorch module layer-by-layer."""
    for p in layers:
        y = jnp.maximum(x @ p["w"] + p["b"], 0.0)
        scale = p["gamma"] / jnp.sqrt(p["var"] + BN_EPS)
        shift = p["beta"] - p["mean"] * scale
        x = y * scale + shift
        # Dropout(0.2): identity in eval mode.
    w_out, b_out = out_params
    return x @ w_out + b_out


def forward_ref_packed(x, w_stack, b_stack, num_outputs):
    """Reference mirroring the kernel math exactly (bf16 matmul, f32 acc,
    bf16 output rounding)."""
    B, num_inputs = x.shape
    L, P, _ = w_stack.shape
    act = x.astype(jnp.bfloat16)
    out = None
    for l in range(L):
        w = w_stack[l]
        if l == 0 and num_inputs != P:
            w = w[:num_inputs, :]
        y = jnp.dot(act, w, preferred_element_type=jnp.float32) + b_stack[l]
        if l < L - 1:
            act = jnp.maximum(y, 0.0).astype(jnp.bfloat16)
        else:
            out = y.astype(jnp.bfloat16).astype(jnp.float32)
    return out[:, :num_outputs]


if __name__ == "__main__":
    num_inputs, num_outputs = 16, 4
    layer_sizes = [32, 32]
    batch = 8

    key = jax.random.PRNGKey(0)
    key, xkey = jax.random.split(key)
    x = jax.random.normal(xkey, (batch, num_inputs), jnp.float32)

    layers, out_params = init_params(key, num_inputs, num_outputs, layer_sizes)
    w_stack, b_stack = prepare_params(layers, out_params, num_inputs)

    y = forward(x, w_stack, b_stack, num_outputs)
    y = jax.block_until_ready(y)
    assert y.shape == (batch, num_outputs)
    assert y.dtype == jnp.float32

    # Check vs a reference doing identical bf16-matmul / f32-acc / bf16-out math.
    y_exact = forward_ref_packed(x, w_stack, b_stack, num_outputs)
    assert jnp.allclose(y, y_exact, atol=1e-2, rtol=1e-2), "mismatch vs packed ref"

    # Looser check vs the pure-f32, layer-by-layer module semantics
    # (difference is bf16 quantization of matmul operands + bf16 output).
    y_f32 = forward_ref_f32(x, layers, out_params)
    assert jnp.allclose(y, y_f32, atol=5e-2, rtol=5e-2), "mismatch vs f32 ref"

    print("KERNEL_OK")
</pallas_src>

<mosaic_0001>
module attributes {stable_mosaic.version = 11 : i64} {
  func.func @_fused_mlp_kernel(%arg0: i32, %arg1: memref<8x16xf32, #tpu.memory_space<vmem>>, %arg2: memref<3x128x128xbf16, #tpu.memory_space<vmem>>, %arg3: memref<3x1x128xf32, #tpu.memory_space<vmem>>, %arg4: memref<8x128xbf16, #tpu.memory_space<vmem>>) attributes {dimension_semantics = [#tpu.dimension_semantics<parallel>], iteration_bounds = array<i64: 1>, scalar_prefetch = 0 : i64, scratch_operands = 0 : i64, tpu.core_type = #tpu.core_type<tc>, window_params = [{transform_indices = @transform_0, window_bounds = array<i64: 8, 16>}, {pipeline_mode = #tpu.pipeline_mode<synchronous>, transform_indices = @transform_1, window_bounds = array<i64: 3, 128, 128>}, {pipeline_mode = #tpu.pipeline_mode<synchronous>, transform_indices = @transform_2, window_bounds = array<i64: 3, 1, 128>}, {transform_indices = @transform_3, window_bounds = array<i64: 8, 128>}]} {
    %c0 = arith.constant 0 : index
    %c0_0 = arith.constant 0 : index
    %0 = vector.load %arg1[%c0, %c0_0] : memref<8x16xf32, #tpu.memory_space<vmem>>, vector<8x16xf32>
    %1 = arith.truncf %0 : vector<8x16xf32> to vector<8x16xbf16>
    %c0_1 = arith.constant 0 : index
    %c0_2 = arith.constant 0 : index
    %c0_3 = arith.constant 0 : index
    %2 = vector.load %arg2[%c0_1, %c0_2, %c0_3] : memref<3x128x128xbf16, #tpu.memory_space<vmem>>, vector<1x128x128xbf16>
    %3 = vector.shape_cast %2 : vector<1x128x128xbf16> to vector<128x128xbf16>
    %4 = vector.extract_strided_slice %3 {offsets = [0, 0], sizes = [16, 128], strides = [1, 1]} : vector<128x128xbf16> to vector<16x128xbf16>
    %cst = arith.constant dense<0.000000e+00> : vector<8x128xf32>
    %5 = tpu.matmul %1, %4, %cst {dimension_numbers = #tpu.dot_dimension_numbers<[1], [0], [0], [1], [0, 0, 1, 1], [], []>} : vector<8x16xbf16>, vector<16x128xbf16>, vector<8x128xf32> -> vector<8x128xf32>
    %c0_4 = arith.constant 0 : index
    %c0_5 = arith.constant 0 : index
    %c0_6 = arith.constant 0 : index
    %6 = vector.load %arg3[%c0_4, %c0_5, %c0_6] : memref<3x1x128xf32, #tpu.memory_space<vmem>>, vector<1x1x128xf32>
    %7 = vector.shape_cast %6 : vector<1x1x128xf32> to vector<1x128xf32>
    %8 = vector.broadcast %7 : vector<1x128xf32> to vector<8x128xf32>
    %9 = arith.addf %5, %8 : vector<8x128xf32>
    %cst_7 = arith.constant 0.000000e+00 : f32
    %10 = vector.broadcast %cst_7 : f32 to vector<8x128xf32>
    %11 = arith.maximumf %9, %10 : vector<8x128xf32>
    %12 = arith.truncf %11 : vector<8x128xf32> to vector<8x128xbf16>
    %c1 = arith.constant 1 : index
    %c0_8 = arith.constant 0 : index
    %c0_9 = arith.constant 0 : index
    %13 = vector.load %arg2[%c1, %c0_8, %c0_9] : memref<3x128x128xbf16, #tpu.memory_space<vmem>>, vector<1x128x128xbf16>
    %14 = vector.shape_cast %13 : vector<1x128x128xbf16> to vector<128x128xbf16>
    %cst_10 = arith.constant dense<0.000000e+00> : vector<8x128xf32>
    %15 = tpu.matmul %12, %14, %cst_10 {dimension_numbers = #tpu.dot_dimension_numbers<[1], [0], [0], [1], [0, 0, 1, 1], [], []>} : vector<8x128xbf16>, vector<128x128xbf16>, vector<8x128xf32> -> vector<8x128xf32>
    %c1_11 = arith.constant 1 : index
    %c0_12 = arith.constant 0 : index
    %c0_13 = arith.constant 0 : index
    %16 = vector.load %arg3[%c1_11, %c0_12, %c0_13] : memref<3x1x128xf32, #tpu.memory_space<vmem>>, vector<1x1x128xf32>
    %17 = vector.shape_cast %16 : vector<1x1x128xf32> to vector<1x128xf32>
    %18 = vector.broadcast %17 : vector<1x128xf32> to vector<8x128xf32>
    %19 = arith.addf %15, %18 : vector<8x128xf32>
    %cst_14 = arith.constant 0.000000e+00 : f32
    %20 = vector.broadcast %cst_14 : f32 to vector<8x128xf32>
    %21 = arith.maximumf %19, %20 : vector<8x128xf32>
    %22 = arith.truncf %21 : vector<8x128xf32> to vector<8x128xbf16>
    %c2 = arith.constant 2 : index
    %c0_15 = arith.constant 0 : index
    %c0_16 = arith.constant 0 : index
    %23 = vector.load %arg2[%c2, %c0_15, %c0_16] : memref<3x128x128xbf16, #tpu.memory_space<vmem>>, vector<1x128x128xbf16>
    %24 = vector.shape_cast %23 : vector<1x128x128xbf16> to vector<128x128xbf16>
    %cst_17 = arith.constant dense<0.000000e+00> : vector<8x128xf32>
    %25 = tpu.matmul %22, %24, %cst_17 {dimension_numbers = #tpu.dot_dimension_numbers<[1], [0], [0], [1], [0, 0, 1, 1], [], []>} : vector<8x128xbf16>, vector<128x128xbf16>, vector<8x128xf32> -> vector<8x128xf32>
    %c2_18 = arith.constant 2 : index
    %c0_19 = arith.constant 0 : index
    %c0_20 = arith.constant 0 : index
    %26 = vector.load %arg3[%c2_18, %c0_19, %c0_20] : memref<3x1x128xf32, #tpu.memory_space<vmem>>, vector<1x1x128xf32>
    %27 = vector.shape_cast %26 : vector<1x1x128xf32> to vector<1x128xf32>
    %28 = vector.broadcast %27 : vector<1x128xf32> to vector<8x128xf32>
    %29 = arith.addf %25, %28 : vector<8x128xf32>
    %30 = arith.truncf %29 : vector<8x128xf32> to vector<8x128xbf16>
    %c0_21 = arith.constant 0 : index
    %c0_22 = arith.constant 0 : index
    %31 = vector.load %arg4[%c0_21, %c0_22] : memref<8x128xbf16, #tpu.memory_space<vmem>>, vector<8x128xbf16>
    tpu.vector_store %arg4[%c0_21, %c0_22], %30 {strides = array<i32>} : memref<8x128xbf16, #tpu.memory_space<vmem>>, vector<8x128xbf16>,
    return
  }
  func.func @transform_0(%arg0: i32) -> (i32, i32) {
    %c0_i32 = arith.constant 0 : i32
    %c0_i32_0 = arith.constant 0 : i32
    return %arg0, %c0_i32 : i32, i32
  }
  func.func @transform_1(%arg0: i32) -> (i32, i32, i32) {
    %c0_i32 = arith.constant 0 : i32
    %c0_i32_0 = arith.constant 0 : i32
    %c0_i32_1 = arith.constant 0 : i32
    %c0_i32_2 = arith.constant 0 : i32
    return %c0_i32, %c0_i32_0, %c0_i32_1 : i32, i32, i32
  }
  func.func @transform_2(%arg0: i32) -> (i32, i32, i32) {
    %c0_i32 = arith.constant 0 : i32
    %c0_i32_0 = arith.constant 0 : i32
    %c0_i32_1 = arith.constant 0 : i32
    %c0_i32_2 = arith.constant 0 : i32
    return %c0_i32, %c0_i32_0, %c0_i32_1 : i32, i32, i32
  }
  func.func @transform_3(%arg0: i32) -> (i32, i32) {
    %c0_i32 = arith.constant 0 : i32
    %c0_i32_0 = arith.constant 0 : i32
    return %arg0, %c0_i32 : i32, i32
  }
}

</mosaic_0001>

<llo_original>
// kernel: forward.1
$region0: #{forward.1}
  #allocation0 [shape = 'u32[]', space=smem, size = 0x4, offset = 0x4, fixed_abs, tag = 'smem constant byte address 0x4 - core index']
  #allocation1 [shape = 'u32[144,128]{1,0:T(1,128)}', space=vmem, size = 0x12000, scoped, tag = 'internal scratch']
  %s0 = inlined_call_operand.hbm [shape: f32[8,16], index: 0, kind: input, shape index: {}]
  %s1 = inlined_call_operand.hbm [shape: bf16[3,128,128], index: 1, kind: input, shape index: {}]
  %s2 = inlined_call_operand.vmem [shape: f32[3,1,128], index: 2, kind: input, shape index: {}]
  %s3 = inlined_call_operand.vmem [shape: bf16[8,128], index: 3, kind: output, shape index: {}]
  %s4 = sld [smem:[#allocation0]]
  $region30: #{forward.1} parent=0
    _
  %s6 = ssub.s32 1, %s4
  %s7 = scalar_select 0, %s6, %s4
  $region1: #{forward.1} parent=0
    #allocation2 [shape = 'u8[4096]{0}', space=vmem, size = 0x1000, scoped, tag = 'input window, operand 0, single buffered']
    #allocation3 [shape = 's32[1]{0}', space=sflag, size = 0x4, scoped, tag = 'scoped memory for forward.1']
    #allocation4 [shape = 'u8[98304]{0}', space=vmem, size = 0x18000, scoped, tag = 'input window, operand 1, single buffered']
    #allocation5 [shape = 's32[1]{0}', space=sflag, size = 0x4, scoped, tag = 'scoped memory for forward.1']
    %8 = vsyncpa [#allocation3], 0
    %9 = vsyncpa [#allocation5], 0
    // Predicated region
    $region2: #{forward.1} parent=1 // pred_check
      _
    $region3: #{forward.1} parent=1 // pred_check_branch
      %11 = sbr.rel (0) target = $region5
    $region4: #{forward.1} parent=1 // pred_region
      %s13 = ssub.s32 128, 128
      %14 = vsyncadd [#allocation3], %s13
      %s16 = sshll.u32 [#allocation2], 4
      %s17 = int_to_ptr.vmem [resolvable:$true] %s16
      %19 = dma.hbm_to_vmem [thread:$0]  %s0, 128, %s17, [#allocation3]
    $region5: #{forward.1} parent=1 // pred_fallthru
      _
    // Predicated region
    $region6: #{forward.1} parent=1 // pred_check
      _
    $region7: #{forward.1} parent=1 // pred_check_branch
      %21 = sbr.rel (0) target = $region9
    $region8: #{forward.1} parent=1 // pred_region
      %s23 = ssub.s32 3072, 3072
      %24 = vsyncadd [#allocation5], %s23
      %s25 = sshll.u32 [#allocation4], 4
      %s26 = int_to_ptr.vmem [resolvable:$true] %s25
      %31 = dma.hbm_to_vmem [thread:$0]  %s1, 3072, %s26, [#allocation5], 64, 64, 4
    $region9: #{forward.1} parent=1 // pred_fallthru
      _
    // Predicated region
    $region10: #{forward.1} parent=1 // pred_check
      _
    $region11: #{forward.1} parent=1 // pred_check_branch
      %33 = sbr.rel (0) target = $region13
    $region12: #{forward.1} parent=1 // pred_region
      _
    $region13: #{forward.1} parent=1 // pred_fallthru
      _
    // Predicated region
    $region14: #{forward.1} parent=1 // pred_check
      _
    $region15: #{forward.1} parent=1 // pred_check_branch
      %35 = sbr.rel (0) target = $region17
    $region16: #{forward.1} parent=1 // pred_region
      %36 = dma.done [#allocation3], 128
    $region17: #{forward.1} parent=1 // pred_fallthru
      _
    // Predicated region
    $region18: #{forward.1} parent=1 // pred_check
      _
    $region19: #{forward.1} parent=1 // pred_check_branch
      %38 = sbr.rel (0) target = $region21
    $region20: #{forward.1} parent=1 // pred_region
      %39 = dma.done [#allocation5], 3072
    $region21: #{forward.1} parent=1 // pred_fallthru
      _
    %v41 = vld [vmem:[#allocation2] sm:$0xff]
    %v42 = vpack.c.bf16 %v41, %v41
    %v43 = vld [vmem:[#allocation4] sm:$0xf]
    %v44 = vld [vmem:[#allocation4 + $0x4] sm:$0xf]
    %v45 = vld [vmem:[%s2] sm:$0x1]
    %v47 = vlaneseq
    %v48 = vshrl.u32 %v47, 7
    %v49 = vsub.s32 0, %v48
    %v50 = vrot.slane %v45, %v49
    %v54 = vunpack.c.l.b16 %v43
    %v55 = vunpack.c.l.b16 %v44
    %v56 = vpack.c.b16 %v55, %v54
    %vm58 = vcmask 130048
    %v60 = vsel %vm58, %v42, 0
    %62 = vmatprep.subr.bf16.mxu0 0
    %63 = vmatpush1.bf16.msra.mxu0 %v56
    %64 = vmatprep.subr.bf16.mxu0 0
    %65 = vmatpush1.bf16.msra.mxu0 0
    %66 = vmatprep.subr.bf16.mxu0 0
    %67 = vmatpush1.bf16.msra.mxu0 0
    %68 = vmatprep.subr.bf16.mxu0 0
    %69 = vmatpush1.bf16.msra.mxu0 0
    %70 = vmatprep.subr.bf16.mxu0 0
    %71 = vmatpush1.bf16.msra.mxu0 0
    %72 = vmatprep.subr.bf16.mxu0 0
    %73 = vmatpush1.bf16.msra.mxu0 0
    %74 = vmatprep.subr.bf16.mxu0 0
    %75 = vmatpush1.bf16.msra.mxu0 0
    %76 = vmatprep.subr.bf16.mxu0 0
    %77 = vmatpush1.bf16.msra.mxu0 0
    %78 = vmatprep.subr.bf16.mxu0 0
    %79 = vmatpush1.bf16.msra.mxu0 0
    %80 = vmatprep.subr.bf16.mxu0 0
    %81 = vmatpush1.bf16.msra.mxu0 0
    %82 = vmatprep.subr.bf16.mxu0 0
    %83 = vmatpush1.bf16.msra.mxu0 0
    %84 = vmatprep.subr.bf16.mxu0 0
    %85 = vmatpush1.bf16.msra.mxu0 0
    %86 = vmatprep.subr.bf16.mxu0 0
    %87 = vmatpush1.bf16.msra.mxu0 0
    %88 = vmatprep.subr.bf16.mxu0 0
    %89 = vmatpush1.bf16.msra.mxu0 0
    %90 = vmatprep.subr.bf16.mxu0 0
    %91 = vmatpush1.bf16.msra.mxu0 0
    %92 = vmatprep.subr.bf16.mxu0 0
    %93 = vmatpush1.bf16.msra.mxu0 0
    %94 = vmatprep.mubr.bf16.mxu0 0
    %95 = vmatmul.mubr.bf16.gmra.mrb[0].mxu0 %v60
    %v96 = vpop.f32.mrb[0].mxu0
    %v97 = vadd.f32 %v50, %v96
    %v98 = vpop.f32.mrb[0].mxu0
    %v99 = vpop.f32.mrb[0].mxu0
    %v100 = vpop.f32.mrb[0].mxu0
    %101 = vdwg.mxu0
    %v102 = vmax.f32 %v97, 0.0
    %v103 = vpack.c.bf16 %v102, %v102
    %s104 = scalar_lea.vmem [#allocation4], 64
    %v105 = vld [vmem:[%s104] sm:$0xf]
    %v106 = vld [vmem:[%s104 + $0x4] sm:$0xf]
    %v107 = vld [vmem:[%s104 + $0x8] sm:$0xf]
    %v108 = vld [vmem:[%s104 + $0xc] sm:$0xf]
    %v109 = vld [vmem:[%s104 + $0x10] sm:$0xf]
    %v110 = vld [vmem:[%s104 + $0x14] sm:$0xf]
    %v111 = vld [vmem:[%s104 + $0x18] sm:$0xf]
    %v112 = vld [vmem:[%s104 + $0x1c] sm:$0xf]
    %v113 = vld [vmem:[%s104 + $0x20] sm:$0xf]
    %v114 = vld [vmem:[%s104 + $0x24] sm:$0xf]
    %v115 = vld [vmem:[%s104 + $0x28] sm:$0xf]
    %v116 = vld [vmem:[%s104 + $0x2c] sm:$0xf]
    %v117 = vld [vmem:[%s104 + $0x30] sm:$0xf]
    %v118 = vld [vmem:[%s104 + $0x34] sm:$0xf]
    %v119 = vld [vmem:[%s104 + $0x38] sm:$0xf]
    %v120 = vld [vmem:[%s104 + $0x3c] sm:$0xf]
    %s121 = scalar_lea.vmem %s2, 1
    %v122 = vld [vmem:[%s121] sm:$0x1]
    %v124 = vlaneseq
    %v125 = vshrl.u32 %v124, 7
    %v126 = vsub.s32 0, %v125
    %v127 = vrot.slane %v122, %v126
    %v145 = vunpack.c.l.b16 %v105
    %v146 = vunpack.c.l.b16 %v106
    %v147 = vunpack.c.l.b16 %v107
    %v148 = vunpack.c.l.b16 %v108
    %v149 = vunpack.c.l.b16 %v109
    %v150 = vunpack.c.l.b16 %v110
    %v151 = vunpack.c.l.b16 %v111
    %v152 = vunpack.c.l.b16 %v112
    %v153 = vunpack.c.l.b16 %v113
    %v154 = vunpack.c.l.b16 %v114
    %v155 = vunpack.c.l.b16 %v115
    %v156 = vunpack.c.l.b16 %v116
    %v157 = vunpack.c.l.b16 %v117
    %v158 = vunpack.c.l.b16 %v118
    %v159 = vunpack.c.l.b16 %v119
    %v160 = vunpack.c.l.b16 %v120
    %v161 = vpack.c.b16 %v146, %v145
    %v162 = vpack.c.b16 %v148, %v147
    %v163 = vpack.c.b16 %v150, %v149
    %v164 = vpack.c.b16 %v152, %v151
    %v165 = vpack.c.b16 %v154, %v153
    %v166 = vpack.c.b16 %v156, %v155
    %v167 = vpack.c.b16 %v158, %v157
    %v168 = vpack.c.b16 %v160, %v159
    %177 = vmatprep.subr.bf16.mxu0 0
    %178 = vmatpush1.bf16.msra.mxu0 %v161
    %179 = vmatprep.subr.bf16.mxu0 0
    %180 = vmatpush1.bf16.msra.mxu0 %v162
    %181 = vmatprep.subr.bf16.mxu0 0
    %182 = vmatpush1.bf16.msra.mxu0 %v163
    %183 = vmatprep.subr.bf16.mxu0 0
    %184 = vmatpush1.bf16.msra.mxu0 %v164
    %185 = vmatprep.subr.bf16.mxu0 0
    %186 = vmatpush1.bf16.msra.mxu0 %v165
    %187 = vmatprep.subr.bf16.mxu0 0
    %188 = vmatpush1.bf16.msra.mxu0 %v166
    %189 = vmatprep.subr.bf16.mxu0 0
    %190 = vmatpush1.bf16.msra.mxu0 %v167
    %191 = vmatprep.subr.bf16.mxu0 0
    %192 = vmatpush1.bf16.msra.mxu0 %v168
    %193 = vmatprep.subr.bf16.mxu0 0
    %194 = vmatpush1.bf16.msra.mxu0 0
    %195 = vmatprep.subr.bf16.mxu0 0
    %196 = vmatpush1.bf16.msra.mxu0 0
    %197 = vmatprep.subr.bf16.mxu0 0
    %198 = vmatpush1.bf16.msra.mxu0 0
    %199 = vmatprep.subr.bf16.mxu0 0
    %200 = vmatpush1.bf16.msra.mxu0 0
    %201 = vmatprep.subr.bf16.mxu0 0
    %202 = vmatpush1.bf16.msra.mxu0 0
    %203 = vmatprep.subr.bf16.mxu0 0
    %204 = vmatpush1.bf16.msra.mxu0 0
    %205 = vmatprep.subr.bf16.mxu0 0
    %206 = vmatpush1.bf16.msra.mxu0 0
    %207 = vmatprep.subr.bf16.mxu0 0
    %208 = vmatpush1.bf16.msra.mxu0 0
    %209 = vmatprep.mubr.bf16.mxu0 0
    %210 = vmatmul.mubr.bf16.gmra.mrb[0].mxu0 %v103
    %v211 = vpop.f32.mrb[0].mxu0
    %v212 = vadd.f32 %v127, %v211
    %v213 = vpop.f32.mrb[0].mxu0
    %v214 = vpop.f32.mrb[0].mxu0
    %v215 = vpop.f32.mrb[0].mxu0
    %216 = vdwg.mxu0
    %v217 = vmax.f32 %v212, 0.0
    %v218 = vpack.c.bf16 %v217, %v217
    %s219 = scalar_lea.vmem [#allocation4], 128
    %v220 = vld [vmem:[%s219] sm:$0xf]
    %v221 = vld [vmem:[%s219 + $0x4] sm:$0xf]
    %v222 = vld [vmem:[%s219 + $0x8] sm:$0xf]
    %v223 = vld [vmem:[%s219 + $0xc] sm:$0xf]
    %v224 = vld [vmem:[%s219 + $0x10] sm:$0xf]
    %v225 = vld [vmem:[%s219 + $0x14] sm:$0xf]
    %v226 = vld [vmem:[%s219 + $0x18] sm:$0xf]
    %v227 = vld [vmem:[%s219 + $0x1c] sm:$0xf]
    %v228 = vld [vmem:[%s219 + $0x20] sm:$0xf]
    %v229 = vld [vmem:[%s219 + $0x24] sm:$0xf]
    %v230 = vld [vmem:[%s219 + $0x28] sm:$0xf]
    %v231 = vld [vmem:[%s219 + $0x2c] sm:$0xf]
    %v232 = vld [vmem:[%s219 + $0x30] sm:$0xf]
    %v233 = vld [vmem:[%s219 + $0x34] sm:$0xf]
    %v234 = vld [vmem:[%s219 + $0x38] sm:$0xf]
    %v235 = vld [vmem:[%s219 + $0x3c] sm:$0xf]
    %s236 = scalar_lea.vmem %s2, 2
    %v237 = vld [vmem:[%s236] sm:$0x1]
    %v239 = vlaneseq
    %v240 = vshrl.u32 %v239, 7
    %v241 = vsub.s32 0, %v240
    %v242 = vrot.slane %v237, %v241
    %v260 = vunpack.c.l.b16 %v220
    %v261 = vunpack.c.l.b16 %v221
    %v262 = vunpack.c.l.b16 %v222
    %v263 = vunpack.c.l.b16 %v223
    %v264 = vunpack.c.l.b16 %v224
    %v265 = vunpack.c.l.b16 %v225
    %v266 = vunpack.c.l.b16 %v226
    %v267 = vunpack.c.l.b16 %v227
    %v268 = vunpack.c.l.b16 %v228
    %v269 = vunpack.c.l.b16 %v229
    %v270 = vunpack.c.l.b16 %v230
    %v271 = vunpack.c.l.b16 %v231
    %v272 = vunpack.c.l.b16 %v232
    %v273 = vunpack.c.l.b16 %v233
    %v274 = vunpack.c.l.b16 %v234
    %v275 = vunpack.c.l.b16 %v235
    %v276 = vpack.c.b16 %v261, %v260
    %v277 = vpack.c.b16 %v263, %v262
    %v278 = vpack.c.b16 %v265, %v264
    %v279 = vpack.c.b16 %v267, %v266
    %v280 = vpack.c.b16 %v269, %v268
    %v281 = vpack.c.b16 %v271, %v270
    %v282 = vpack.c.b16 %v273, %v272
    %v283 = vpack.c.b16 %v275, %v274
    %292 = vmatprep.subr.bf16.mxu0 0
    %293 = vmatpush1.bf16.msra.mxu0 %v276
    %294 = vmatprep.subr.bf16.mxu0 0
    %295 = vmatpush1.bf16.msra.mxu0 %v277
    %296 = vmatprep.subr.bf16.mxu0 0
    %297 = vmatpush1.bf16.msra.mxu0 %v278
    %298 = vmatprep.subr.bf16.mxu0 0
    %299 = vmatpush1.bf16.msra.mxu0 %v279
    %300 = vmatprep.subr.bf16.mxu0 0
    %301 = vmatpush1.bf16.msra.mxu0 %v280
    %302 = vmatprep.subr.bf16.mxu0 0
    %303 = vmatpush1.bf16.msra.mxu0 %v281
    %304 = vmatprep.subr.bf16.mxu0 0
    %305 = vmatpush1.bf16.msra.mxu0 %v282
    %306 = vmatprep.subr.bf16.mxu0 0
    %307 = vmatpush1.bf16.msra.mxu0 %v283
    %308 = vmatprep.subr.bf16.mxu0 0
    %309 = vmatpush1.bf16.msra.mxu0 0
    %310 = vmatprep.subr.bf16.mxu0 0
    %311 = vmatpush1.bf16.msra.mxu0 0
    %312 = vmatprep.subr.bf16.mxu0 0
    %313 = vmatpush1.bf16.msra.mxu0 0
    %314 = vmatprep.subr.bf16.mxu0 0
    %315 = vmatpush1.bf16.msra.mxu0 0
    %316 = vmatprep.subr.bf16.mxu0 0
    %317 = vmatpush1.bf16.msra.mxu0 0
    %318 = vmatprep.subr.bf16.mxu0 0
    %319 = vmatpush1.bf16.msra.mxu0 0
    %320 = vmatprep.subr.bf16.mxu0 0
    %321 = vmatpush1.bf16.msra.mxu0 0
    %322 = vmatprep.subr.bf16.mxu0 0
    %323 = vmatpush1.bf16.msra.mxu0 0
    %324 = vmatprep.mubr.bf16.mxu0 0
    %325 = vmatmul.mubr.bf16.gmra.mrb[0].mxu0 %v218
    %v326 = vpop.f32.mrb[0].mxu0
    %v327 = vadd.f32 %v242, %v326
    %v328 = vpop.f32.mrb[0].mxu0
    %v329 = vpop.f32.mrb[0].mxu0
    %v330 = vpop.f32.mrb[0].mxu0
    %331 = vdwg.mxu0
    %v332 = vpack.c.bf16 %v327, %v327
    %333 = vst [vmem:[%s3] sm:$0xf] %v332
    // Predicated region
    $region22: #{forward.1} parent=1 // pred_check
      _
    $region23: #{forward.1} parent=1 // pred_check_branch
      %335 = sbr.rel (0) target = $region25
    $region24: #{forward.1} parent=1 // pred_region
      _
    $region25: #{forward.1} parent=1 // pred_fallthru
      _
    // Predicated region
    $region26: #{forward.1} parent=1 // pred_check
      _
    $region27: #{forward.1} parent=1 // pred_check_branch
      %337 = sbr.rel (0) target = $region29
    $region28: #{forward.1} parent=1 // pred_region
      _
    $region29: #{forward.1} parent=1 // pred_fallthru
      _
    %338 = vsyncpa [#allocation3], 1
    %339 = vsyncpa [#allocation5], 1

</llo_original>
